<compile_context>
chip_gen: v7x
topology: tpu7x:2x2x1
jax: 0.10.0
libtpu: 0.0.40
codegen_flags: <defaults>
</compile_context>

<pallas_src>
import jax
import jax.numpy as jnp
from jax.experimental import pallas as pl
from jax.experimental.pallas import tpu as pltpu


def _round_up(n, k):
    return ((n + k - 1) // k) * k


def regnet_kernel(x_ref, w_ref, b_ref, o_ref):
    # x_ref: (TM, k*D) VMEM, x's native dtype
    # w_ref: (k*D, k)  VMEM f32  (block-diagonal folded weight, pre-cast)
    # b_ref: (1,)      SMEM f32  scalar
    # o_ref: (TM, k)   VMEM
    x = x_ref[...].astype(jnp.float32)                 # cast in VMEM, not HBM
    acc = jnp.dot(x, w_ref[...], preferred_element_type=jnp.float32)
    o_ref[...] = (acc + b_ref[0]).astype(o_ref.dtype)


def _device_profile():
    """Per-generation tiling knobs: (block byte target, vmem limit, core-parallel)."""
    kind = ""
    try:
        kind = jax.devices()[0].device_kind.lower()
    except Exception:
        pass
    if "v7" in kind:
        # 2 TCs @ ~3.2 TB/s each, 64 MiB physical VMEM (32 MiB scoped default):
        # big blocks + explicit vmem budget, shard row tiles across the cores.
        return 8 << 20, 48 << 20, True
    if "v6" in kind:
        # 128 MiB VMEM (32 MiB scoped default): ~4 MiB blocks, no limit change.
        return 4 << 20, None, False
    # v5e and unrecognized parts: ~2 MiB blocks already sit on the HBM-roofline
    # plateau and a double buffer fits the 16 MiB scoped default comfortably.
    return 2 << 20, None, False


def _choose_fold(m, d_model):
    """How many consecutive rows to fold into the 128-lane axis."""
    if d_model >= 128:
        return 1
    k = max(1, 128 // d_model)
    while m % k != 0:          # only fold evenly -> no HBM padding copy needed
        k -= 1
    return k


def _choose_tm(m_rows, lane_width, itemsize, target_bytes):
    """Row-tile size from a lane-padding-aware VMEM/DMA cost (no 1024 cap)."""
    # A (TM, lane_width) block really occupies TM * round_up(lane_width,128)
    # * itemsize in VMEM; budget against that, not the raw element count.
    padded_row_bytes = _round_up(lane_width, 128) * itemsize
    tm = max(1, target_bytes // max(1, padded_row_bytes))
    # Sublane-pack alignment: 8 rows (f32), 16 (bf16), 32 (int8/fp8).
    sub_mult = 8 * max(1, 4 // itemsize)
    tm = max(sub_mult, (tm // sub_mult) * sub_mult)
    if tm >= m_rows:
        tm = m_rows            # single full block (block dims == array dims)
    return tm


def regnet_forward(x, weight, bias):
    """x: (..., d_model); weight: (1, d_model); bias: (1,). Returns (..., 1)."""
    d_model = x.shape[-1]
    lead = x.shape[:-1]
    out_dtype = jnp.promote_types(x.dtype, weight.dtype)

    x2d = x.reshape(-1, d_model)                      # native dtype, free reshape
    m = x2d.shape[0]
    itemsize = jnp.dtype(x2d.dtype).itemsize

    target_bytes, vmem_limit, core_parallel = _device_profile()

    # --- lane folding for narrow d_model -------------------------------------
    k = _choose_fold(m, d_model)
    dk = k * d_model
    m_rows = m // k
    x_fold = x2d.reshape(m_rows, dk)                  # row-major -> free bitcast

    # Block-diagonal folded weight, pre-cast to f32 in the wrapper:
    #   w_fold[g*D + d, g] = weight[0, d]; column g picks out folded row g.
    w_f32 = weight.reshape(d_model).astype(jnp.float32)
    w_fold = (jnp.eye(k, dtype=jnp.float32)[:, None, :]
              * w_f32[None, :, None]).reshape(dk, k)
    b1 = bias.reshape(1).astype(jnp.float32)          # scalar -> SMEM

    # --- tiling ---------------------------------------------------------------
    tm = _choose_tm(m_rows, dk, itemsize, target_bytes)
    grid = (pl.cdiv(m_rows, tm),)                     # ragged last block is masked

    dim_sem = (pltpu.CORE_PARALLEL,) if core_parallel else ("parallel",)
    cp_kwargs = dict(dimension_semantics=dim_sem)
    if vmem_limit is not None:
        cp_kwargs["vmem_limit_bytes"] = int(vmem_limit)
    # TODO(synk): on v7x a pipeline_mode=pl.Buffered(3) on the x spec could
    # deepen the prefetch queue further; left at the default double buffer.

    out = pl.pallas_call(
        regnet_kernel,
        out_shape=jax.ShapeDtypeStruct((m_rows, k), out_dtype),
        grid_spec=pltpu.PrefetchScalarGridSpec(
            num_scalar_prefetch=0,
            grid=grid,
            in_specs=[
                pl.BlockSpec((tm, dk), lambda i: (i, 0)),            # x row tile
                pl.BlockSpec((dk, k), lambda i: (0, 0)),             # folded weight (resident)
                pl.BlockSpec(memory_space=pltpu.MemorySpace.SMEM),   # bias scalar in SMEM
            ],
            out_specs=pl.BlockSpec((tm, k), lambda i: (i, 0)),
        ),
        compiler_params=pltpu.CompilerParams(**cp_kwargs),
        cost_estimate=pl.CostEstimate(
            flops=2 * m * d_model,
            transcendentals=0,
            bytes_accessed=m * d_model * itemsize
            + dk * k * 4
            + m_rows * k * jnp.dtype(out_dtype).itemsize,
        ),
    )(x_fold, w_fold, b1)

    # (m_rows, k) row-major flatten restores the original row order exactly.
    return out.reshape(*lead, 1)


def init_regnet_params(key, d_model):
    # Deterministic init matching nn.Linear(d_model, 1) parameter shapes:
    #   weight: (1, d_model), bias: (1,)  (uniform +-1/sqrt(d_model) like PyTorch)
    kw, kb = jax.random.split(key)
    bound = 1.0 / (d_model ** 0.5)
    weight = jax.random.uniform(kw, (1, d_model), jnp.float32, -bound, bound)
    bias = jax.random.uniform(kb, (1,), jnp.float32, -bound, bound)
    return weight, bias


if __name__ == "__main__":
    key = jax.random.PRNGKey(0)
    kx, kp = jax.random.split(key)

    batch, seq, d_model = 2, 8, 32
    x = jax.random.normal(kx, (batch, seq, d_model), jnp.float32)
    weight, bias = init_regnet_params(kp, d_model)

    out = regnet_forward(x, weight, bias)
    out = jax.block_until_ready(out)

    # Reference check against plain JAX (same semantics as nn.Linear forward).
    ref = x @ weight.T + bias
    assert out.shape == (batch, seq, 1), out.shape
    # The in-kernel contraction runs on the MXU; depending on the part and the
    # default matmul precision, f32 operands may go through a bf16-pass
    # decomposition, so use a tolerance that covers that regime (typical
    # observed error is ~1e-6 when the f32 path is exact).
    assert jnp.allclose(out, ref, atol=1e-2, rtol=1e-2), "mismatch vs reference"

    # TODO(synk): self.dr (Dropout) is defined but never used in RegNet.forward,
    # so no dropout kernel is emitted.

    print("KERNEL_OK")
</pallas_src>

<mosaic_0001>
module attributes {stable_mosaic.version = 11 : i64} {
  func.func @regnet_kernel(%arg0: i32, %arg1: memref<4x128xf32, #tpu.memory_space<vmem>>, %arg2: memref<128x4xf32, #tpu.memory_space<vmem>>, %arg3: memref<1xf32, #tpu.memory_space<smem>>, %arg4: memref<4x4xf32, #tpu.memory_space<vmem>>) attributes {dimension_semantics = [#tpu.dimension_semantics<parallel>], iteration_bounds = array<i64: 1>, scalar_prefetch = 0 : i64, scratch_operands = 0 : i64, tpu.core_type = #tpu.core_type<tc>, window_params = [{transform_indices = @transform_0, window_bounds = array<i64: 4, 128>}, {pipeline_mode = #tpu.pipeline_mode<synchronous>, transform_indices = @transform_1, window_bounds = array<i64: 128, 4>}, {transform_indices = @transform_2, window_bounds = array<i64: 1>}, {transform_indices = @transform_3, window_bounds = array<i64: 4, 4>}]} {
    %c0 = arith.constant 0 : index
    %c0_0 = arith.constant 0 : index
    %0 = vector.load %arg1[%c0, %c0_0] : memref<4x128xf32, #tpu.memory_space<vmem>>, vector<4x128xf32>
    %c0_1 = arith.constant 0 : index
    %c0_2 = arith.constant 0 : index
    %1 = vector.load %arg2[%c0_1, %c0_2] : memref<128x4xf32, #tpu.memory_space<vmem>>, vector<128x4xf32>
    %cst = arith.constant dense<0.000000e+00> : vector<4x4xf32>
    %2 = tpu.matmul %0, %1, %cst {dimension_numbers = #tpu.dot_dimension_numbers<[1], [0], [0], [1], [0, 0, 1, 1], [], []>} : vector<4x128xf32>, vector<128x4xf32>, vector<4x4xf32> -> vector<4x4xf32>
    %c0_3 = arith.constant 0 : index
    %3 = memref.load %arg3[%c0_3] : memref<1xf32, #tpu.memory_space<smem>>
    %4 = vector.broadcast %3 : f32 to vector<4x4xf32>
    %5 = arith.addf %2, %4 : vector<4x4xf32>
    %c0_4 = arith.constant 0 : index
    %c0_5 = arith.constant 0 : index
    %6 = vector.load %arg4[%c0_4, %c0_5] : memref<4x4xf32, #tpu.memory_space<vmem>>, vector<4x4xf32>
    tpu.vector_store %arg4[%c0_4, %c0_5], %5 {strides = array<i32>} : memref<4x4xf32, #tpu.memory_space<vmem>>, vector<4x4xf32>,
    return
  }
  func.func @transform_0(%arg0: i32) -> (i32, i32) {
    %c0_i32 = arith.constant 0 : i32
    %c0_i32_0 = arith.constant 0 : i32
    return %arg0, %c0_i32 : i32, i32
  }
  func.func @transform_1(%arg0: i32) -> (i32, i32) {
    %c0_i32 = arith.constant 0 : i32
    %c0_i32_0 = arith.constant 0 : i32
    %c0_i32_1 = arith.constant 0 : i32
    return %c0_i32, %c0_i32_0 : i32, i32
  }
  func.func @transform_2(%arg0: i32) -> i32 {
    %c0_i32 = arith.constant 0 : i32
    %c0_i32_0 = arith.constant 0 : i32
    return %c0_i32 : i32
  }
  func.func @transform_3(%arg0: i32) -> (i32, i32) {
    %c0_i32 = arith.constant 0 : i32
    %c0_i32_0 = arith.constant 0 : i32
    return %arg0, %c0_i32 : i32, i32
  }
}

</mosaic_0001>

<llo_original>
// kernel: tpu_custom_call.1
$region0: #{tpu_custom_call.1}
  #allocation0 [shape = 'u32[]', space=smem, size = 0x4, offset = 0x4, fixed_abs, tag = 'smem constant byte address 0x4 - core index']
  #allocation1 [shape = 'u32[144,128]{1,0:T(1,128)}', space=vmem, size = 0x12000, scoped, tag = 'internal scratch']
  #allocation2 [shape = 'f32[1]{0:T(128)S(6)}', space=smem, size = 0x200, scoped, tag = 'scoped memory for tpu_custom_call.1']
  %s0 = inlined_call_operand.vmem [shape: f32[4,128], index: 0, kind: input, shape index: {}]
  %s1 = inlined_call_operand.vmem [shape: f32[128,4], index: 1, kind: input, shape index: {}]
  %s2 = inlined_call_operand.<no memory space> [shape: f32[1], index: 2, kind: input, shape index: {}]
  %s3 = inlined_call_operand.hbm [shape: f32[4,4], index: 3, kind: output, shape index: {}]
  %s4 = sld [smem:[#allocation0]]
  $region22: #{tpu_custom_call.1} parent=0
    _
  %s6 = ssub.s32 1, %s4
  %s7 = scalar_select 0, %s6, %s4
  %8 = sst [smem:[#allocation2]] %s2
  $region1: #{tpu_custom_call.1} parent=0
    #allocation3 [shape = 'u8[2048]{0}', space=vmem, size = 0x800, scoped, tag = 'output window, operand 0, single buffered']
    #allocation4 [shape = 's32[1]{0}', space=sflag, size = 0x4, scoped, tag = 'scoped memory for tpu_custom_call.1']
    %9 = vsyncpa [#allocation4], 0
    // Predicated region
    $region2: #{tpu_custom_call.1} parent=1 // pred_check
      _
    $region3: #{tpu_custom_call.1} parent=1 // pred_check_branch
      %11 = sbr.rel (0) target = $region5
    $region4: #{tpu_custom_call.1} parent=1 // pred_region
      _
    $region5: #{tpu_custom_call.1} parent=1 // pred_fallthru
      _
    // Predicated region
    $region6: #{tpu_custom_call.1} parent=1 // pred_check
      _
    $region7: #{tpu_custom_call.1} parent=1 // pred_check_branch
      %13 = sbr.rel (0) target = $region9
    $region8: #{tpu_custom_call.1} parent=1 // pred_region
      _
    $region9: #{tpu_custom_call.1} parent=1 // pred_fallthru
      _
    // Predicated region
    $region10: #{tpu_custom_call.1} parent=1 // pred_check
      _
    $region11: #{tpu_custom_call.1} parent=1 // pred_check_branch
      %15 = sbr.rel (0) target = $region13
    $region12: #{tpu_custom_call.1} parent=1 // pred_region
      _
    $region13: #{tpu_custom_call.1} parent=1 // pred_fallthru
      _
    %v16 = vld [vmem:[%s0] sm:$0xf]
    %v17 = vld [vmem:[%s1] sm:$0xff]
    %v18 = vld [vmem:[%s1 + $0x8] sm:$0xff]
    %v19 = vld [vmem:[%s1 + $0x10] sm:$0xff]
    %v20 = vld [vmem:[%s1 + $0x18] sm:$0xff]
    %v21 = vld [vmem:[%s1 + $0x20] sm:$0xff]
    %v22 = vld [vmem:[%s1 + $0x28] sm:$0xff]
    %v23 = vld [vmem:[%s1 + $0x30] sm:$0xff]
    %v24 = vld [vmem:[%s1 + $0x38] sm:$0xff]
    %v25 = vld [vmem:[%s1 + $0x40] sm:$0xff]
    %v26 = vld [vmem:[%s1 + $0x48] sm:$0xff]
    %v27 = vld [vmem:[%s1 + $0x50] sm:$0xff]
    %v28 = vld [vmem:[%s1 + $0x58] sm:$0xff]
    %v29 = vld [vmem:[%s1 + $0x60] sm:$0xff]
    %v30 = vld [vmem:[%s1 + $0x68] sm:$0xff]
    %v31 = vld [vmem:[%s1 + $0x70] sm:$0xff]
    %v32 = vld [vmem:[%s1 + $0x78] sm:$0xff]
    %s33 = sld [smem:[#allocation2]]
    %v34 = vstv %s33
    %35 = vmatprep.subr.mxu0 0.0
    %36 = vmatpush1.msra.mxu0 %v17
    %37 = vmatprep.subr.mxu0 0.0
    %38 = vmatpush1.msra.mxu0 %v18
    %39 = vmatprep.subr.mxu0 0.0
    %40 = vmatpush1.msra.mxu0 %v19
    %41 = vmatprep.subr.mxu0 0.0
    %42 = vmatpush1.msra.mxu0 %v20
    %43 = vmatprep.subr.mxu0 0.0
    %44 = vmatpush1.msra.mxu0 %v21
    %45 = vmatprep.subr.mxu0 0.0
    %46 = vmatpush1.msra.mxu0 %v22
    %47 = vmatprep.subr.mxu0 0.0
    %48 = vmatpush1.msra.mxu0 %v23
    %49 = vmatprep.subr.mxu0 0.0
    %50 = vmatpush1.msra.mxu0 %v24
    %51 = vmatprep.subr.mxu0 0.0
    %52 = vmatpush1.msra.mxu0 %v25
    %53 = vmatprep.subr.mxu0 0.0
    %54 = vmatpush1.msra.mxu0 %v26
    %55 = vmatprep.subr.mxu0 0.0
    %56 = vmatpush1.msra.mxu0 %v27
    %57 = vmatprep.subr.mxu0 0.0
    %58 = vmatpush1.msra.mxu0 %v28
    %59 = vmatprep.subr.mxu0 0.0
    %60 = vmatpush1.msra.mxu0 %v29
    %61 = vmatprep.subr.mxu0 0.0
    %62 = vmatpush1.msra.mxu0 %v30
    %63 = vmatprep.subr.mxu0 0.0
    %64 = vmatpush1.msra.mxu0 %v31
    %65 = vmatprep.subr.mxu0 0.0
    %66 = vmatpush1.msra.mxu0 %v32
    %67 = vmatprep.subr.mxu0 0.0
    %68 = vmatpush1.msra.mxu0 0.0
    %69 = vmatprep.subr.mxu0 0.0
    %70 = vmatpush1.msra.mxu0 0.0
    %71 = vmatprep.subr.mxu0 0.0
    %72 = vmatpush1.msra.mxu0 0.0
    %73 = vmatprep.subr.mxu0 0.0
    %74 = vmatpush1.msra.mxu0 0.0
    %75 = vmatprep.subr.mxu0 0.0
    %76 = vmatpush1.msra.mxu0 0.0
    %77 = vmatprep.subr.mxu0 0.0
    %78 = vmatpush1.msra.mxu0 0.0
    %79 = vmatprep.subr.mxu0 0.0
    %80 = vmatpush1.msra.mxu0 0.0
    %81 = vmatprep.subr.mxu0 0.0
    %82 = vmatpush1.msra.mxu0 0.0
    %83 = vmatprep.subr.mxu0 0.0
    %84 = vmatpush1.msra.mxu0 0.0
    %85 = vmatprep.subr.mxu0 0.0
    %86 = vmatpush1.msra.mxu0 0.0
    %87 = vmatprep.subr.mxu0 0.0
    %88 = vmatpush1.msra.mxu0 0.0
    %89 = vmatprep.subr.mxu0 0.0
    %90 = vmatpush1.msra.mxu0 0.0
    %91 = vmatprep.subr.mxu0 0.0
    %92 = vmatpush1.msra.mxu0 0.0
    %93 = vmatprep.subr.mxu0 0.0
    %94 = vmatpush1.msra.mxu0 0.0
    %95 = vmatprep.subr.mxu0 0.0
    %96 = vmatpush1.msra.mxu0 0.0
    %97 = vmatprep.subr.mxu0 0.0
    %98 = vmatpush1.msra.mxu0 0.0
    %99 = vmatprep.mubr.f32.mxu0 0.0
    %100 = vmatmul.mubr.f32.gmra.mrb[0].mxu0 %v16
    %v101 = vpop.f32.mrb[0].mxu0
    %v102 = vadd.f32 %v34, %v101
    %v103 = vpop.f32.mrb[0].mxu0
    %104 = vdwg.mxu0
    %vm105 = vcmask 27648
    %106 = vst.msk [vmem:[#allocation3] sm:$0xf] %vm105, %v102
    // Predicated region
    $region14: #{tpu_custom_call.1} parent=1 // pred_check
      _
    $region15: #{tpu_custom_call.1} parent=1 // pred_check_branch
      %108 = sbr.rel (0) target = $region17
    $region16: #{tpu_custom_call.1} parent=1 // pred_region
      %s110 = ssub.s32 64, 64
      %111 = vsyncadd [#allocation4], %s110
      %s113 = sshll.u32 [#allocation3], 4
      %s114 = int_to_ptr.vmem [resolvable:$true] %s113
      %116 = dma.vmem_to_hbm [thread:$0]  %s114, 64, %s3, [#allocation4]
    $region17: #{tpu_custom_call.1} parent=1 // pred_fallthru
      _
    // Predicated region
    $region18: #{tpu_custom_call.1} parent=1 // pred_check
      _
    $region19: #{tpu_custom_call.1} parent=1 // pred_check_branch
      %118 = sbr.rel (0) target = $region21
    $region20: #{tpu_custom_call.1} parent=1 // pred_region
      %119 = dma.done [#allocation4], 64
    $region21: #{tpu_custom_call.1} parent=1 // pred_fallthru
      _
    %120 = vsyncpa [#allocation4], 1

</llo_original>
